<compile_context>
chip_gen: v5e
topology: v5e:2x2
jax: 0.10.0
libtpu: 0.0.40
codegen_flags: <defaults>
</compile_context>

<pallas_src>
import functools
import math

import numpy as np
import jax
import jax.numpy as jnp
from jax.experimental import pallas as pl
from jax.experimental.pallas import tpu as pltpu


# ----------------------------------------------------------------------------
# Fused DFGNN kernel
# ----------------------------------------------------------------------------

def _dfgnn_kernel(xf_ref, x4_ref, x2_ref, eg_ref, e2_ref,
                  wgc_ref, wbig_ref, bg_ref, wr_ref, br_ref, c_ref,
                  o_ref, *, fs, K):
    f32 = jnp.float32
    four_fs = 4 * fs

    xf = xf_ref[...]                                            # (M, fs) f32
    M = xf.shape[0]

    # gc = [gc_0(x)|...|gc_{K-1}(x)]; only its element statistics feed the
    # output (torch.var(gc)) -- the arrangement is irrelevant for var.
    gc = jnp.dot(xf.astype(jnp.bfloat16), wgc_ref[...],
                 preferred_element_type=f32)                    # (M, K*fs)

    # Unbiased variances over all elements (torch.var default).
    n1 = xf.size
    mu1 = jnp.sum(xf) / n1
    var1 = jnp.sum((xf - mu1) * (xf - mu1)) / (n1 - 1)
    n2 = gc.size
    mu2 = jnp.sum(gc) / n2
    var2 = jnp.sum((gc - mu2) * (gc - mu2)) / (n2 - 1)

    # ---- main LSTM gate path -------------------------------------------------
    # z[:, k-block] = x4 @ (blockdiag(A_k*W_k) @ [Wf|Wi|Wo|WC])  (pre-fused).
    z = jnp.dot(x4_ref[...].astype(jnp.bfloat16), wbig_ref[...],
                preferred_element_type=f32)                     # (B*L/4, K*4fs)
    pre = jnp.zeros((M, four_fs), f32)
    for k in range(K):                                          # static unroll
        pre = pre + jnp.dot(eg_ref[k], z[:, k * four_fs:(k + 1) * four_fs],
                            preferred_element_type=f32)
    pre = pre + bg_ref[...]                                     # rows hitting the
                                                                # zero Hidden block
                                                                # get bias only.

    def lstm_h(p):
        # Cell state is identically zero in forward(input) -> forget branch dead.
        gi = jax.nn.sigmoid(p[:, 1 * fs:2 * fs])
        go = jax.nn.sigmoid(p[:, 2 * fs:3 * fs])
        gc_ = jnp.tanh(p[:, 3 * fs:4 * fs])
        return go * jnp.tanh(gi * gc_)

    hidden = lstm_h(pre)                                        # (M, fs)

    # ---- reverse (r*) gate path ----------------------------------------------
    x2e = jnp.dot(e2_ref[...], x2_ref[...],
                  preferred_element_type=f32)                   # (M, 2fs)
    ry = jnp.dot(x2e.astype(jnp.bfloat16), wr_ref[...],
                 preferred_element_type=f32) + br_ref[...]      # (M, 4fs)
    rhidden = lstm_h(ry)                                        # (M, fs)

    # ---- variance-weighted blend ----------------------------------------------
    c = c_ref[0]
    inv = 1.0 / (var1 + var2 * c)
    o_ref[...] = (hidden * (var1 * c) + rhidden * var2) * inv


def dfgnn_forward(params, x, *, K=3):
    """Full DFGNN forward (default zero states) in a single pallas_call."""
    B, L, fs = x.shape
    assert K == 3, "reference forward() broadcasting is only consistent for K == 3"
    assert L % 4 == 0 and L >= 4
    M = B * L
    G = L // 4
    BG = B * G
    BH = B * (L // 2)

    # Free, contiguous re-views of x (no data movement).
    xf = x.reshape(M, fs)
    x4 = x.reshape(BG, 4 * fs)          # 4 consecutive time rows per row
    x2 = x.reshape(BH, 2 * fs)          # 2 consecutive time rows per row

    # Constant 0/1 routing matrices (compile-time constants, ~1 KiB): they
    # implement the torch cat/view row shuffles and the all-zero Hidden/rHidden
    # rows without any in-kernel gather or wrapper-side concat/transpose.
    e_gate = np.zeros((K, M, BG), np.float32)
    e2 = np.zeros((M, BH), np.float32)
    for b in range(B):
        for l in range(L):
            m = b * L + l
            k, r = l // G, l % G
            if k < K:                    # l >= 3L/4 hits the zero Hidden block
                e_gate[k, m, b * G + r] = 1.0
            if l < L // 2:               # l >= L/2 hits the zero rHidden block
                e2[m, b * (L // 2) + l] = 1.0
    e_gate = jnp.asarray(e_gate)
    e2 = jnp.asarray(e2)

    kernel = functools.partial(_dfgnn_kernel, fs=fs, K=K)
    out = pl.pallas_call(
        kernel,
        out_shape=jax.ShapeDtypeStruct((M, fs), jnp.float32),
        grid=(1,),
        in_specs=[
            pl.BlockSpec((M, fs), lambda i: (0, 0)),                 # x_flat
            pl.BlockSpec((BG, 4 * fs), lambda i: (0, 0)),            # x4
            pl.BlockSpec((BH, 2 * fs), lambda i: (0, 0)),            # x2
            pl.BlockSpec((K, M, BG), lambda i: (0, 0, 0)),           # gate routing
            pl.BlockSpec((M, BH), lambda i: (0, 0)),                 # r routing
            pl.BlockSpec((fs, K * fs), lambda i: (0, 0)),            # W_gc (bf16)
            pl.BlockSpec((4 * fs, K * 4 * fs), lambda i: (0, 0)),    # W_big (bf16)
            pl.BlockSpec((1, 4 * fs), lambda i: (0, 0)),             # gate bias
            pl.BlockSpec((2 * fs, 4 * fs), lambda i: (0, 0)),        # W_r (bf16)
            pl.BlockSpec((1, 4 * fs), lambda i: (0, 0)),             # r bias
            pl.BlockSpec(memory_space=pltpu.MemorySpace.SMEM),       # c scalar
        ],
        out_specs=pl.BlockSpec((M, fs), lambda i: (0, 0)),
        compiler_params=pltpu.CompilerParams(
            dimension_semantics=("arbitrary",),
            vmem_limit_bytes=32 * 1024 * 1024,
        ),
    )(xf, x4, x2, e_gate, e2,
      params["wgc_cat_bf16"], params["w_big_bf16"], params["b_gates_row"],
      params["w_r_bf16"], params["b_rgates_row"], params["c_vec"])
    return out.reshape(B, L, fs)


# ----------------------------------------------------------------------------
# Parameters (DFGNN.__init__ semantics) + pre-fused / pre-cast kernel weights
# ----------------------------------------------------------------------------

def make_params(key, fs, K, A):
    it = iter(jax.random.split(key, 32))

    def unif(shape, bound):
        return jax.random.uniform(next(it), shape, jnp.float32, -bound, bound)

    # D_inverse = diag(1/(sum(A,0)+1e-8)); norm_A = D_inverse @ A; clamped powers.
    colsum = jnp.sum(A, axis=0) + 1e-8
    norm_a = A / colsum[:, None]
    a_list = []
    a_t = jnp.eye(fs, dtype=jnp.float32)
    for _ in range(K):
        a_t = jnp.minimum(a_t @ norm_a, 1.0)       # torch.clamp(max=1.0)
        a_list.append(a_t)

    # DynamicFilterGNN (assumed FilterLinear): y = x @ (A_k * W_k)^T, no bias.
    wgc_eff = []
    for k in range(K):
        w = unif((fs, fs), 1.0 / math.sqrt(fs))    # PyTorch (out,in) layout
        wgc_eff.append((a_list[k] * w).T)

    def linear(in_f):
        b = 1.0 / math.sqrt(in_f)
        return unif((fs, in_f), b), unif((fs,), b)

    fl, il, ol, cl = [linear(4 * fs) for _ in range(4)]
    w_gates = jnp.concatenate([fl[0].T, il[0].T, ol[0].T, cl[0].T], axis=1)  # (4fs,4fs)
    b_gates = jnp.concatenate([fl[1], il[1], ol[1], cl[1]])
    rfl, ril, rol, rcl = [linear(2 * fs) for _ in range(4)]
    w_rgates = jnp.concatenate([rfl[0].T, ril[0].T, rol[0].T, rcl[0].T], axis=1)  # (2fs,4fs)
    b_rgates = jnp.concatenate([rfl[1], ril[1], rol[1], rcl[1]])

    neighbor = unif((fs,), 1.0 / math.sqrt(fs))
    nc_vec = a_list[-1] @ neighbor                 # feeds f*NC which is 0 (zero cell)

    # Pre-fused + pre-cast kernel weights: W_big[k] = blockdiag_4(A_k*W_k) @ gates.
    eye4 = jnp.eye(4, dtype=jnp.float32)
    w_big = jnp.concatenate(
        [jnp.kron(eye4, wgc_eff[k]) @ w_gates for k in range(K)], axis=1)  # (4fs, K*4fs)

    return dict(
        # reference-side (f32)
        wgc_eff=jnp.stack(wgc_eff),
        w_gates=w_gates, b_gates=b_gates,
        w_rgates=w_rgates, b_rgates=b_rgates,
        nc_vec=nc_vec, c=jnp.ones((), jnp.float32),
        # kernel-side (pre-cast / pre-fused)
        wgc_cat_bf16=jnp.concatenate(wgc_eff, axis=1).astype(jnp.bfloat16),
        w_big_bf16=w_big.astype(jnp.bfloat16),
        w_r_bf16=w_rgates.astype(jnp.bfloat16),
        b_gates_row=b_gates.reshape(1, 4 * fs).astype(jnp.float32),
        b_rgates_row=b_rgates.reshape(1, 4 * fs).astype(jnp.float32),
        c_vec=jnp.ones((1,), jnp.float32),
    )


# ----------------------------------------------------------------------------
# Pure-JAX f32 reference mirroring the torch ops (for in-script verification)
# ----------------------------------------------------------------------------

def dfgnn_reference(params, x, *, K=3):
    B, L, fs = x.shape
    wgc = params["wgc_eff"]
    gc = jnp.concatenate([x @ wgc[k] for k in range(K)], axis=1)          # (B,K*L,fs)
    hidden0 = jnp.zeros((B, L, fs), x.dtype)
    cell0 = jnp.zeros((B, L, fs), x.dtype)
    combined = jnp.concatenate([gc, hidden0], axis=1)
    combined = combined.reshape(B, (K + 1) * L // 4, 4 * fs)
    y = combined @ params["w_gates"] + params["b_gates"]
    f = jax.nn.sigmoid(y[..., 0 * fs:1 * fs])
    i = jax.nn.sigmoid(y[..., 1 * fs:2 * fs])
    o = jax.nn.sigmoid(y[..., 2 * fs:3 * fs])
    C = jnp.tanh(y[..., 3 * fs:4 * fs])
    nc = cell0 * params["nc_vec"]
    hidden = o * jnp.tanh(f * nc + i * C)
    rcomb = jnp.concatenate([x, jnp.zeros((B, L, fs), x.dtype)], axis=1)
    rcomb = rcomb.reshape(B, L, 2 * fs)
    ry = rcomb @ params["w_rgates"] + params["b_rgates"]
    rf = jax.nn.sigmoid(ry[..., 0 * fs:1 * fs])
    ri = jax.nn.sigmoid(ry[..., 1 * fs:2 * fs])
    ro = jax.nn.sigmoid(ry[..., 2 * fs:3 * fs])
    rC = jnp.tanh(ry[..., 3 * fs:4 * fs])
    rhidden = ro * jnp.tanh(rf * jnp.zeros_like(rC) + ri * rC)
    var1 = jnp.var(x, ddof=1)
    var2 = jnp.var(gc, ddof=1)
    c = params["c"]
    return (hidden * var1 * c + rhidden * var2) / (var1 + var2 * c)


# ----------------------------------------------------------------------------
# Main
# ----------------------------------------------------------------------------

if __name__ == "__main__":
    B, L = 2, 8            # batch, time_steps
    fs = 32                # feature_size == hidden_size
    K = 3                  # number of graph-conv filters (reference requires 3)

    key = jax.random.PRNGKey(0)
    k_a, k_x, k_p = jax.random.split(key, 3)
    A = jax.random.uniform(k_a, (fs, fs), jnp.float32, 0.0, 1.0)
    params = make_params(k_p, fs, K, A)
    x = jax.random.normal(k_x, (B, L, fs), dtype=jnp.float32)

    fwd = jax.jit(lambda p, xx: dfgnn_forward(p, xx, K=K))
    out = jax.block_until_ready(fwd(params, x))

    assert out.shape == (B, L, fs), out.shape
    assert bool(jnp.all(jnp.isfinite(out)))

    ref = jax.block_until_ready(
        jax.jit(lambda p, xx: dfgnn_reference(p, xx, K=K))(params, x))
    max_err = float(jnp.max(jnp.abs(out - ref)))
    assert max_err < 5e-2, f"max_err={max_err}"

    print("KERNEL_OK")
</pallas_src>

<mosaic_0001>
module attributes {stable_mosaic.version = 11 : i64} {
  func.func @_dfgnn_kernel(%arg0: i32, %arg1: memref<16x32xf32, #tpu.memory_space<vmem>>, %arg2: memref<4x128xf32, #tpu.memory_space<vmem>>, %arg3: memref<8x64xf32, #tpu.memory_space<vmem>>, %arg4: memref<3x16x4xf32, #tpu.memory_space<vmem>>, %arg5: memref<16x8xf32, #tpu.memory_space<vmem>>, %arg6: memref<32x96xbf16, #tpu.memory_space<vmem>>, %arg7: memref<128x384xbf16, #tpu.memory_space<vmem>>, %arg8: memref<1x128xf32, #tpu.memory_space<vmem>>, %arg9: memref<64x128xbf16, #tpu.memory_space<vmem>>, %arg10: memref<1x128xf32, #tpu.memory_space<vmem>>, %arg11: memref<1xf32, #tpu.memory_space<smem>>, %arg12: memref<16x32xf32, #tpu.memory_space<vmem>>) attributes {dimension_semantics = [#tpu.dimension_semantics<arbitrary>], iteration_bounds = array<i64: 1>, scalar_prefetch = 0 : i64, scratch_operands = 0 : i64, tpu.core_type = #tpu.core_type<tc>, window_params = [{pipeline_mode = #tpu.pipeline_mode<synchronous>, transform_indices = @transform_0, window_bounds = array<i64: 16, 32>}, {pipeline_mode = #tpu.pipeline_mode<synchronous>, transform_indices = @transform_1, window_bounds = array<i64: 4, 128>}, {pipeline_mode = #tpu.pipeline_mode<synchronous>, transform_indices = @transform_2, window_bounds = array<i64: 8, 64>}, {pipeline_mode = #tpu.pipeline_mode<synchronous>, transform_indices = @transform_3, window_bounds = array<i64: 3, 16, 4>}, {pipeline_mode = #tpu.pipeline_mode<synchronous>, transform_indices = @transform_4, window_bounds = array<i64: 16, 8>}, {pipeline_mode = #tpu.pipeline_mode<synchronous>, transform_indices = @transform_5, window_bounds = array<i64: 32, 96>}, {pipeline_mode = #tpu.pipeline_mode<synchronous>, transform_indices = @transform_6, window_bounds = array<i64: 128, 384>}, {pipeline_mode = #tpu.pipeline_mode<synchronous>, transform_indices = @transform_7, window_bounds = array<i64: 1, 128>}, {pipeline_mode = #tpu.pipeline_mode<synchronous>, transform_indices = @transform_8, window_bounds = array<i64: 64, 128>}, {pipeline_mode = #tpu.pipeline_mode<synchronous>, transform_indices = @transform_9, window_bounds = array<i64: 1, 128>}, {transform_indices = @transform_10, window_bounds = array<i64: 1>}, {pipeline_mode = #tpu.pipeline_mode<synchronous>, transform_indices = @transform_11, window_bounds = array<i64: 16, 32>}]} {
    %c0 = arith.constant 0 : index
    %c0_0 = arith.constant 0 : index
    %0 = vector.load %arg1[%c0, %c0_0] : memref<16x32xf32, #tpu.memory_space<vmem>>, vector<16x32xf32>
    %1 = arith.truncf %0 : vector<16x32xf32> to vector<16x32xbf16>
    %c0_1 = arith.constant 0 : index
    %c0_2 = arith.constant 0 : index
    %2 = vector.load %arg6[%c0_1, %c0_2] : memref<32x96xbf16, #tpu.memory_space<vmem>>, vector<32x96xbf16>
    %cst = arith.constant dense<0.000000e+00> : vector<16x96xf32>
    %3 = tpu.matmul %1, %2, %cst {dimension_numbers = #tpu.dot_dimension_numbers<[1], [0], [0], [1], [0, 0, 1, 1], [], []>} : vector<16x32xbf16>, vector<32x96xbf16>, vector<16x96xf32> -> vector<16x96xf32>
    %4 = vector.shape_cast %0 : vector<16x32xf32> to vector<1x16x32xf32>
    %cst_3 = arith.constant dense<0.000000e+00> : vector<1xf32>
    %5 = vector.multi_reduction <add>, %4, %cst_3 [1, 2] : vector<1x16x32xf32> to vector<1xf32>
    %6 = vector.shape_cast %5 : vector<1xf32> to vector<1x1x1xf32>
    %7 = vector.extract %6[0, 0, 0] : f32 from vector<1x1x1xf32>
    %cst_4 = arith.constant 5.120000e+02 : f32
    %8 = arith.divf %7, %cst_4 : f32
    %9 = vector.broadcast %8 : f32 to vector<16x32xf32>
    %10 = arith.subf %0, %9 : vector<16x32xf32>
    %11 = vector.broadcast %8 : f32 to vector<16x32xf32>
    %12 = arith.subf %0, %11 : vector<16x32xf32>
    %13 = arith.mulf %10, %12 : vector<16x32xf32>
    %14 = vector.shape_cast %13 : vector<16x32xf32> to vector<1x16x32xf32>
    %cst_5 = arith.constant dense<0.000000e+00> : vector<1xf32>
    %15 = vector.multi_reduction <add>, %14, %cst_5 [1, 2] : vector<1x16x32xf32> to vector<1xf32>
    %16 = vector.shape_cast %15 : vector<1xf32> to vector<1x1x1xf32>
    %17 = vector.extract %16[0, 0, 0] : f32 from vector<1x1x1xf32>
    %cst_6 = arith.constant 5.110000e+02 : f32
    %18 = arith.divf %17, %cst_6 : f32
    %19 = vector.shape_cast %3 : vector<16x96xf32> to vector<1x16x96xf32>
    %cst_7 = arith.constant dense<0.000000e+00> : vector<1xf32>
    %20 = vector.multi_reduction <add>, %19, %cst_7 [1, 2] : vector<1x16x96xf32> to vector<1xf32>
    %21 = vector.shape_cast %20 : vector<1xf32> to vector<1x1x1xf32>
    %22 = vector.extract %21[0, 0, 0] : f32 from vector<1x1x1xf32>
    %cst_8 = arith.constant 1.536000e+03 : f32
    %23 = arith.divf %22, %cst_8 : f32
    %24 = vector.broadcast %23 : f32 to vector<16x96xf32>
    %25 = arith.subf %3, %24 : vector<16x96xf32>
    %26 = vector.broadcast %23 : f32 to vector<16x96xf32>
    %27 = arith.subf %3, %26 : vector<16x96xf32>
    %28 = arith.mulf %25, %27 : vector<16x96xf32>
    %29 = vector.shape_cast %28 : vector<16x96xf32> to vector<1x16x96xf32>
    %cst_9 = arith.constant dense<0.000000e+00> : vector<1xf32>
    %30 = vector.multi_reduction <add>, %29, %cst_9 [1, 2] : vector<1x16x96xf32> to vector<1xf32>
    %31 = vector.shape_cast %30 : vector<1xf32> to vector<1x1x1xf32>
    %32 = vector.extract %31[0, 0, 0] : f32 from vector<1x1x1xf32>
    %cst_10 = arith.constant 1.535000e+03 : f32
    %33 = arith.divf %32, %cst_10 : f32
    %c0_11 = arith.constant 0 : index
    %c0_12 = arith.constant 0 : index
    %34 = vector.load %arg2[%c0_11, %c0_12] : memref<4x128xf32, #tpu.memory_space<vmem>>, vector<4x128xf32>
    %35 = arith.truncf %34 : vector<4x128xf32> to vector<4x128xbf16>
    %c0_13 = arith.constant 0 : index
    %c0_14 = arith.constant 0 : index
    %36 = vector.load %arg7[%c0_13, %c0_14] : memref<128x384xbf16, #tpu.memory_space<vmem>>, vector<128x384xbf16>
    %cst_15 = arith.constant dense<0.000000e+00> : vector<4x384xf32>
    %37 = tpu.matmul %35, %36, %cst_15 {dimension_numbers = #tpu.dot_dimension_numbers<[1], [0], [0], [1], [0, 0, 1, 1], [], []>} : vector<4x128xbf16>, vector<128x384xbf16>, vector<4x384xf32> -> vector<4x384xf32>
    %cst_16 = arith.constant 0.000000e+00 : f32
    %38 = vector.broadcast %cst_16 : f32 to vector<16x128xf32>
    %c0_17 = arith.constant 0 : index
    %c0_18 = arith.constant 0 : index
    %c0_19 = arith.constant 0 : index
    %39 = vector.load %arg4[%c0_17, %c0_18, %c0_19] : memref<3x16x4xf32, #tpu.memory_space<vmem>>, vector<1x16x4xf32>
    %40 = vector.shape_cast %39 : vector<1x16x4xf32> to vector<16x4xf32>
    %41 = vector.extract_strided_slice %37 {offsets = [0, 0], sizes = [4, 128], strides = [1, 1]} : vector<4x384xf32> to vector<4x128xf32>
    %cst_20 = arith.constant dense<0.000000e+00> : vector<16x128xf32>
    %42 = tpu.matmul %40, %41, %cst_20 {dimension_numbers = #tpu.dot_dimension_numbers<[1], [0], [0], [1], [0, 0, 1, 1], [], []>} : vector<16x4xf32>, vector<4x128xf32>, vector<16x128xf32> -> vector<16x128xf32>
    %43 = arith.addf %38, %42 : vector<16x128xf32>
    %c1 = arith.constant 1 : index
    %c0_21 = arith.constant 0 : index
    %c0_22 = arith.constant 0 : index
    %44 = vector.load %arg4[%c1, %c0_21, %c0_22] : memref<3x16x4xf32, #tpu.memory_space<vmem>>, vector<1x16x4xf32>
    %45 = vector.shape_cast %44 : vector<1x16x4xf32> to vector<16x4xf32>
    %46 = vector.extract_strided_slice %37 {offsets = [0, 128], sizes = [4, 128], strides = [1, 1]} : vector<4x384xf32> to vector<4x128xf32>
    %cst_23 = arith.constant dense<0.000000e+00> : vector<16x128xf32>
    %47 = tpu.matmul %45, %46, %cst_23 {dimension_numbers = #tpu.dot_dimension_numbers<[1], [0], [0], [1], [0, 0, 1, 1], [], []>} : vector<16x4xf32>, vector<4x128xf32>, vector<16x128xf32> -> vector<16x128xf32>
    %48 = arith.addf %43, %47 : vector<16x128xf32>
    %c2 = arith.constant 2 : index
    %c0_24 = arith.constant 0 : index
    %c0_25 = arith.constant 0 : index
    %49 = vector.load %arg4[%c2, %c0_24, %c0_25] : memref<3x16x4xf32, #tpu.memory_space<vmem>>, vector<1x16x4xf32>
    %50 = vector.shape_cast %49 : vector<1x16x4xf32> to vector<16x4xf32>
    %51 = vector.extract_strided_slice %37 {offsets = [0, 256], sizes = [4, 128], strides = [1, 1]} : vector<4x384xf32> to vector<4x128xf32>
    %cst_26 = arith.constant dense<0.000000e+00> : vector<16x128xf32>
    %52 = tpu.matmul %50, %51, %cst_26 {dimension_numbers = #tpu.dot_dimension_numbers<[1], [0], [0], [1], [0, 0, 1, 1], [], []>} : vector<16x4xf32>, vector<4x128xf32>, vector<16x128xf32> -> vector<16x128xf32>
    %53 = arith.addf %48, %52 : vector<16x128xf32>
    %c0_27 = arith.constant 0 : index
    %c0_28 = arith.constant 0 : index
    %54 = vector.load %arg8[%c0_27, %c0_28] : memref<1x128xf32, #tpu.memory_space<vmem>>, vector<1x128xf32>
    %55 = vector.broadcast %54 : vector<1x128xf32> to vector<16x128xf32>
    %56 = arith.addf %53, %55 : vector<16x128xf32>
    %57 = vector.extract_strided_slice %56 {offsets = [0, 32], sizes = [16, 32], strides = [1, 1]} : vector<16x128xf32> to vector<16x32xf32>
    %58 = arith.negf %57 : vector<16x32xf32>
    %59 = math.exp %58 : vector<16x32xf32>
    %cst_29 = arith.constant 1.000000e+00 : f32
    %60 = vector.broadcast %cst_29 : f32 to vector<16x32xf32>
    %61 = arith.addf %60, %59 : vector<16x32xf32>
    %62 = arith.divf %60, %61 : vector<16x32xf32>
    %63 = vector.extract_strided_slice %56 {offsets = [0, 64], sizes = [16, 32], strides = [1, 1]} : vector<16x128xf32> to vector<16x32xf32>
    %64 = arith.negf %63 : vector<16x32xf32>
    %65 = math.exp %64 : vector<16x32xf32>
    %cst_30 = arith.constant 1.000000e+00 : f32
    %66 = vector.broadcast %cst_30 : f32 to vector<16x32xf32>
    %67 = arith.addf %66, %65 : vector<16x32xf32>
    %68 = arith.divf %66, %67 : vector<16x32xf32>
    %69 = vector.extract_strided_slice %56 {offsets = [0, 96], sizes = [16, 32], strides = [1, 1]} : vector<16x128xf32> to vector<16x32xf32>
    %70 = math.tanh %69 : vector<16x32xf32>
    %71 = arith.mulf %62, %70 : vector<16x32xf32>
    %72 = math.tanh %71 : vector<16x32xf32>
    %73 = arith.mulf %68, %72 : vector<16x32xf32>
    %c0_31 = arith.constant 0 : index
    %c0_32 = arith.constant 0 : index
    %74 = vector.load %arg5[%c0_31, %c0_32] : memref<16x8xf32, #tpu.memory_space<vmem>>, vector<16x8xf32>
    %c0_33 = arith.constant 0 : index
    %c0_34 = arith.constant 0 : index
    %75 = vector.load %arg3[%c0_33, %c0_34] : memref<8x64xf32, #tpu.memory_space<vmem>>, vector<8x64xf32>
    %cst_35 = arith.constant dense<0.000000e+00> : vector<16x64xf32>
    %76 = tpu.matmul %74, %75, %cst_35 {dimension_numbers = #tpu.dot_dimension_numbers<[1], [0], [0], [1], [0, 0, 1, 1], [], []>} : vector<16x8xf32>, vector<8x64xf32>, vector<16x64xf32> -> vector<16x64xf32>
    %77 = arith.truncf %76 : vector<16x64xf32> to vector<16x64xbf16>
    %c0_36 = arith.constant 0 : index
    %c0_37 = arith.constant 0 : index
    %78 = vector.load %arg9[%c0_36, %c0_37] : memref<64x128xbf16, #tpu.memory_space<vmem>>, vector<64x128xbf16>
    %cst_38 = arith.constant dense<0.000000e+00> : vector<16x128xf32>
    %79 = tpu.matmul %77, %78, %cst_38 {dimension_numbers = #tpu.dot_dimension_numbers<[1], [0], [0], [1], [0, 0, 1, 1], [], []>} : vector<16x64xbf16>, vector<64x128xbf16>, vector<16x128xf32> -> vector<16x128xf32>
    %c0_39 = arith.constant 0 : index
    %c0_40 = arith.constant 0 : index
    %80 = vector.load %arg10[%c0_39, %c0_40] : memref<1x128xf32, #tpu.memory_space<vmem>>, vector<1x128xf32>
    %81 = vector.broadcast %80 : vector<1x128xf32> to vector<16x128xf32>
    %82 = arith.addf %79, %81 : vector<16x128xf32>
    %83 = vector.extract_strided_slice %82 {offsets = [0, 32], sizes = [16, 32], strides = [1, 1]} : vector<16x128xf32> to vector<16x32xf32>
    %84 = arith.negf %83 : vector<16x32xf32>
    %85 = math.exp %84 : vector<16x32xf32>
    %cst_41 = arith.constant 1.000000e+00 : f32
    %86 = vector.broadcast %cst_41 : f32 to vector<16x32xf32>
    %87 = arith.addf %86, %85 : vector<16x32xf32>
    %88 = arith.divf %86, %87 : vector<16x32xf32>
    %89 = vector.extract_strided_slice %82 {offsets = [0, 64], sizes = [16, 32], strides = [1, 1]} : vector<16x128xf32> to vector<16x32xf32>
    %90 = arith.negf %89 : vector<16x32xf32>
    %91 = math.exp %90 : vector<16x32xf32>
    %cst_42 = arith.constant 1.000000e+00 : f32
    %92 = vector.broadcast %cst_42 : f32 to vector<16x32xf32>
    %93 = arith.addf %92, %91 : vector<16x32xf32>
    %94 = arith.divf %92, %93 : vector<16x32xf32>
    %95 = vector.extract_strided_slice %82 {offsets = [0, 96], sizes = [16, 32], strides = [1, 1]} : vector<16x128xf32> to vector<16x32xf32>
    %96 = math.tanh %95 : vector<16x32xf32>
    %97 = arith.mulf %88, %96 : vector<16x32xf32>
    %98 = math.tanh %97 : vector<16x32xf32>
    %99 = arith.mulf %94, %98 : vector<16x32xf32>
    %c0_43 = arith.constant 0 : index
    %100 = memref.load %arg11[%c0_43] : memref<1xf32, #tpu.memory_space<smem>>
    %101 = arith.mulf %33, %100 : f32
    %102 = arith.addf %18, %101 : f32
    %cst_44 = arith.constant 1.000000e+00 : f32
    %103 = arith.divf %cst_44, %102 : f32
    %104 = arith.mulf %18, %100 : f32
    %105 = vector.broadcast %104 : f32 to vector<16x32xf32>
    %106 = arith.mulf %73, %105 : vector<16x32xf32>
    %107 = vector.broadcast %33 : f32 to vector<16x32xf32>
    %108 = arith.mulf %99, %107 : vector<16x32xf32>
    %109 = arith.addf %106, %108 : vector<16x32xf32>
    %110 = vector.broadcast %103 : f32 to vector<16x32xf32>
    %111 = arith.mulf %109, %110 : vector<16x32xf32>
    %c0_45 = arith.constant 0 : index
    %c0_46 = arith.constant 0 : index
    %112 = vector.load %arg12[%c0_45, %c0_46] : memref<16x32xf32, #tpu.memory_space<vmem>>, vector<16x32xf32>
    tpu.vector_store %arg12[%c0_45, %c0_46], %111 {strides = array<i32>} : memref<16x32xf32, #tpu.memory_space<vmem>>, vector<16x32xf32>,
    return
  }
  func.func @transform_0(%arg0: i32) -> (i32, i32) {
    %c0_i32 = arith.constant 0 : i32
    %c0_i32_0 = arith.constant 0 : i32
    %c0_i32_1 = arith.constant 0 : i32
    return %c0_i32, %c0_i32_0 : i32, i32
  }
  func.func @transform_1(%arg0: i32) -> (i32, i32) {
    %c0_i32 = arith.constant 0 : i32
    %c0_i32_0 = arith.constant 0 : i32
    %c0_i32_1 = arith.constant 0 : i32
    return %c0_i32, %c0_i32_0 : i32, i32
  }
  func.func @transform_2(%arg0: i32) -> (i32, i32) {
    %c0_i32 = arith.constant 0 : i32
    %c0_i32_0 = arith.constant 0 : i32
    %c0_i32_1 = arith.constant 0 : i32
    return %c0_i32, %c0_i32_0 : i32, i32
  }
  func.func @transform_3(%arg0: i32) -> (i32, i32, i32) {
    %c0_i32 = arith.constant 0 : i32
    %c0_i32_0 = arith.constant 0 : i32
    %c0_i32_1 = arith.constant 0 : i32
    %c0_i32_2 = arith.constant 0 : i32
    return %c0_i32, %c0_i32_0, %c0_i32_1 : i32, i32, i32
  }
  func.func @transform_4(%arg0: i32) -> (i32, i32) {
    %c0_i32 = arith.constant 0 : i32
    %c0_i32_0 = arith.constant 0 : i32
    %c0_i32_1 = arith.constant 0 : i32
    return %c0_i32, %c0_i32_0 : i32, i32
  }
  func.func @transform_5(%arg0: i32) -> (i32, i32) {
    %c0_i32 = arith.constant 0 : i32
    %c0_i32_0 = arith.constant 0 : i32
    %c0_i32_1 = arith.constant 0 : i32
    return %c0_i32, %c0_i32_0 : i32, i32
  }
  func.func @transform_6(%arg0: i32) -> (i32, i32) {
    %c0_i32 = arith.constant 0 : i32
    %c0_i32_0 = arith.constant 0 : i32
    %c0_i32_1 = arith.constant 0 : i32
    return %c0_i32, %c0_i32_0 : i32, i32
  }
  func.func @transform_7(%arg0: i32) -> (i32, i32) {
    %c0_i32 = arith.constant 0 : i32
    %c0_i32_0 = arith.constant 0 : i32
    %c0_i32_1 = arith.constant 0 : i32
    return %c0_i32, %c0_i32_0 : i32, i32
  }
  func.func @transform_8(%arg0: i32) -> (i32, i32) {
    %c0_i32 = arith.constant 0 : i32
    %c0_i32_0 = arith.constant 0 : i32
    %c0_i32_1 = arith.constant 0 : i32
    return %c0_i32, %c0_i32_0 : i32, i32
  }
  func.func @transform_9(%arg0: i32) -> (i32, i32) {
    %c0_i32 = arith.constant 0 : i32
    %c0_i32_0 = arith.constant 0 : i32
    %c0_i32_1 = arith.constant 0 : i32
    return %c0_i32, %c0_i32_0 : i32, i32
  }
  func.func @transform_10(%arg0: i32) -> i32 {
    %c0_i32 = arith.constant 0 : i32
    %c0_i32_0 = arith.constant 0 : i32
    return %c0_i32 : i32
  }
  func.func @transform_11(%arg0: i32) -> (i32, i32) {
    %c0_i32 = arith.constant 0 : i32
    %c0_i32_0 = arith.constant 0 : i32
    %c0_i32_1 = arith.constant 0 : i32
    return %c0_i32, %c0_i32_0 : i32, i32
  }
}

</mosaic_0001>

<llo_original>
// kernel: _lambda_.1
$region0: #{_lambda_.1}
  #allocation0 [shape = 'u32[]', space=smem, size = 0x4, offset = 0x4, fixed_abs, tag = 'smem constant byte address 0x4 - core index']
  #allocation1 [shape = 'u32[72,128]{1,0:T(1,128)}', space=vmem, size = 0x9000, scoped, tag = 'internal scratch']
  #allocation2 [shape = 'f32[1]{0:T(128)S(6)}', space=smem, size = 0x200, scoped, tag = 'scoped memory for _lambda_.1']
  %s0 = inlined_call_operand.vmem [shape: f32[16,32], index: 0, kind: input, shape index: {}]
  %s1 = inlined_call_operand.vmem [shape: f32[4,128], index: 1, kind: input, shape index: {}]
  %s2 = inlined_call_operand.vmem [shape: f32[8,64], index: 2, kind: input, shape index: {}]
  %s3 = inlined_call_operand.hbm [shape: f32[3,16,4], index: 3, kind: input, shape index: {}]
  %s4 = inlined_call_operand.hbm [shape: f32[16,8], index: 4, kind: input, shape index: {}]
  %s5 = inlined_call_operand.hbm [shape: bf16[32,96], index: 5, kind: input, shape index: {}]
  %s6 = inlined_call_operand.hbm [shape: bf16[128,384], index: 6, kind: input, shape index: {}]
  %s7 = inlined_call_operand.vmem [shape: f32[1,128], index: 7, kind: input, shape index: {}]
  %s8 = inlined_call_operand.vmem [shape: bf16[64,128], index: 8, kind: input, shape index: {}]
  %s9 = inlined_call_operand.vmem [shape: f32[1,128], index: 9, kind: input, shape index: {}]
  %s10 = inlined_call_operand.<no memory space> [shape: f32[1], index: 10, kind: input, shape index: {}]
  %s11 = inlined_call_operand.hbm [shape: f32[16,32], index: 11, kind: output, shape index: {}]
  %s12 = sld [smem:[#allocation0]]
  $region70: #{_lambda_.1} parent=0
    _
  %s14 = ssub.s32 1, %s12
  %s15 = scalar_select 0, %s14, %s12
  %16 = sst [smem:[#allocation2]] %s10
  $region1: #{_lambda_.1} parent=0
    #allocation3 [shape = 'u8[24576]{0}', space=vmem, size = 0x6000, scoped, tag = 'input window, operand 3, single buffered']
    #allocation4 [shape = 's32[1]{0}', space=sflag, size = 0x4, scoped, tag = 'scoped memory for _lambda_.1']
    #allocation5 [shape = 's32[1]{0}', space=sflag, size = 0x4, scoped, tag = 'scoped memory for _lambda_.1']
    #allocation6 [shape = 'u8[8192]{0}', space=vmem, size = 0x2000, scoped, tag = 'input window, operand 4, single buffered']
    #allocation7 [shape = 's32[1]{0}', space=sflag, size = 0x4, scoped, tag = 'scoped memory for _lambda_.1']
    #allocation8 [shape = 'u8[8192]{0}', space=vmem, size = 0x2000, scoped, tag = 'input window, operand 5, single buffered']
    #allocation9 [shape = 'u8[98304]{0}', space=vmem, size = 0x18000, scoped, tag = 'input window, operand 6, single buffered']
    #allocation10 [shape = 's32[1]{0}', space=sflag, size = 0x4, scoped, tag = 'scoped memory for _lambda_.1']
    #allocation11 [shape = 'u8[8192]{0}', space=vmem, size = 0x2000, scoped, tag = 'output window, operand 0, single buffered']
    %17 = vsyncpa [#allocation4], 0
    %18 = vsyncpa [#allocation7], 0
    %19 = vsyncpa [#allocation10], 0
    %20 = vsyncpa [#allocation5], 0
    // Predicated region
    $region2: #{_lambda_.1} parent=1 // pred_check
      _
    $region3: #{_lambda_.1} parent=1 // pred_check_branch
      %22 = sbr.rel (0) target = $region5
    $region4: #{_lambda_.1} parent=1 // pred_region
      _
    $region5: #{_lambda_.1} parent=1 // pred_fallthru
      _
    // Predicated region
    $region6: #{_lambda_.1} parent=1 // pred_check
      _
    $region7: #{_lambda_.1} parent=1 // pred_check_branch
      %24 = sbr.rel (0) target = $region9
    $region8: #{_lambda_.1} parent=1 // pred_region
      _
    $region9: #{_lambda_.1} parent=1 // pred_fallthru
      _
    // Predicated region
    $region10: #{_lambda_.1} parent=1 // pred_check
      _
    $region11: #{_lambda_.1} parent=1 // pred_check_branch
      %26 = sbr.rel (0) target = $region13
    $region12: #{_lambda_.1} parent=1 // pred_region
      _
    $region13: #{_lambda_.1} parent=1 // pred_fallthru
      _
    // Predicated region
    $region14: #{_lambda_.1} parent=1 // pred_check
      _
    $region15: #{_lambda_.1} parent=1 // pred_check_branch
      %28 = sbr.rel (0) target = $region17
    $region16: #{_lambda_.1} parent=1 // pred_region
      %30 = vsyncadd [#allocation4], 0
      %s31 = sshll.u32 %s3, 4
      %s32 = int_to_ptr.hbm [resolvable:$true] %s31
      %s33 = sshll.u32 [#allocation3], 4
      %s34 = int_to_ptr.vmem [resolvable:$true] %s33
      %39 = dma.hbm_to_vmem [thread:$0]  %s32, 768, %s34, [#allocation4], 128, 128, 8
    $region17: #{_lambda_.1} parent=1 // pred_fallthru
      _
    // Predicated region
    $region18: #{_lambda_.1} parent=1 // pred_check
      _
    $region19: #{_lambda_.1} parent=1 // pred_check_branch
      %41 = sbr.rel (0) target = $region21
    $region20: #{_lambda_.1} parent=1 // pred_region
      %43 = vsyncadd [#allocation7], 0
      %s44 = sshll.u32 %s4, 4
      %s45 = int_to_ptr.hbm [resolvable:$true] %s44
      %s46 = sshll.u32 [#allocation6], 4
      %s47 = int_to_ptr.vmem [resolvable:$true] %s46
      %52 = dma.hbm_to_vmem [thread:$0]  %s45, 256, %s47, [#allocation7], 128, 128, 8
    $region21: #{_lambda_.1} parent=1 // pred_fallthru
      _
    // Predicated region
    $region22: #{_lambda_.1} parent=1 // pred_check
      _
    $region23: #{_lambda_.1} parent=1 // pred_check_branch
      %54 = sbr.rel (0) target = $region25
    $region24: #{_lambda_.1} parent=1 // pred_region
      %56 = vsyncadd [#allocation7], 0
      %s57 = sshll.u32 %s5, 4
      %s58 = int_to_ptr.hbm [resolvable:$true] %s57
      %s59 = sshll.u32 [#allocation8], 4
      %s60 = int_to_ptr.vmem [resolvable:$true] %s59
      %65 = dma.hbm_to_vmem [thread:$0]  %s58, 256, %s60, [#allocation7], 64, 64, 4
    $region25: #{_lambda_.1} parent=1 // pred_fallthru
      _
    // Predicated region
    $region26: #{_lambda_.1} parent=1 // pred_check
      _
    $region27: #{_lambda_.1} parent=1 // pred_check_branch
      %67 = sbr.rel (0) target = $region29
    $region28: #{_lambda_.1} parent=1 // pred_region
      %69 = vsyncadd [#allocation10], 0
      %s70 = sshll.u32 %s6, 4
      %s71 = int_to_ptr.hbm [resolvable:$true] %s70
      %s72 = sshll.u32 [#allocation9], 4
      %s73 = int_to_ptr.vmem [resolvable:$true] %s72
      %78 = dma.hbm_to_vmem [thread:$0]  %s71, 3072, %s73, [#allocation10], 192, 192, 12
    $region29: #{_lambda_.1} parent=1 // pred_fallthru
      _
    // Predicated region
    $region30: #{_lambda_.1} parent=1 // pred_check
      _
    $region31: #{_lambda_.1} parent=1 // pred_check_branch
      %80 = sbr.rel (0) target = $region33
    $region32: #{_lambda_.1} parent=1 // pred_region
      _
    $region33: #{_lambda_.1} parent=1 // pred_fallthru
      _
    // Predicated region
    $region34: #{_lambda_.1} parent=1 // pred_check
      _
    $region35: #{_lambda_.1} parent=1 // pred_check_branch
      %82 = sbr.rel (0) target = $region37
    $region36: #{_lambda_.1} parent=1 // pred_region
      _
    $region37: #{_lambda_.1} parent=1 // pred_fallthru
      _
    // Predicated region
    $region38: #{_lambda_.1} parent=1 // pred_check
      _
    $region39: #{_lambda_.1} parent=1 // pred_check_branch
      %84 = sbr.rel (0) target = $region41
    $region40: #{_lambda_.1} parent=1 // pred_region
      _
    $region41: #{_lambda_.1} parent=1 // pred_fallthru
      _
    // Predicated region
    $region42: #{_lambda_.1} parent=1 // pred_check
      _
    $region43: #{_lambda_.1} parent=1 // pred_check_branch
      %86 = sbr.rel (0) target = $region45
    $region44: #{_lambda_.1} parent=1 // pred_region
      _
    $region45: #{_lambda_.1} parent=1 // pred_fallthru
      _
    // Predicated region
    $region46: #{_lambda_.1} parent=1 // pred_check
      _
    $region47: #{_lambda_.1} parent=1 // pred_check_branch
      %88 = sbr.rel (0) target = $region49
    $region48: #{_lambda_.1} parent=1 // pred_region
      %90 = dma.done [#allocation4], 768
    $region49: #{_lambda_.1} parent=1 // pred_fallthru
      _
    // Predicated region
    $region50: #{_lambda_.1} parent=1 // pred_check
      _
    $region51: #{_lambda_.1} parent=1 // pred_check_branch
      %92 = sbr.rel (0) target = $region53
    $region52: #{_lambda_.1} parent=1 // pred_region
      %94 = dma.done [#allocation7], 256
    $region53: #{_lambda_.1} parent=1 // pred_fallthru
      _
    // Predicated region
    $region54: #{_lambda_.1} parent=1 // pred_check
      _
    $region55: #{_lambda_.1} parent=1 // pred_check_branch
      %96 = sbr.rel (0) target = $region57
    $region56: #{_lambda_.1} parent=1 // pred_region
      %98 = dma.done [#allocation7], 256
    $region57: #{_lambda_.1} parent=1 // pred_fallthru
      _
    // Predicated region
    $region58: #{_lambda_.1} parent=1 // pred_check
      _
    $region59: #{_lambda_.1} parent=1 // pred_check_branch
      %100 = sbr.rel (0) target = $region61
    $region60: #{_lambda_.1} parent=1 // pred_region
      %102 = dma.done [#allocation10], 3072
    $region61: #{_lambda_.1} parent=1 // pred_fallthru
      _
    %v104 = vld [vmem:[%s0] sm:$0xff]
    %v105 = vld [vmem:[%s0 + $0x8] sm:$0xff]
    %v106 = vpack.c.bf16 %v105, %v104
    %v107 = vld [vmem:[#allocation8] sm:$0xf]
    %v108 = vld [vmem:[#allocation8 + $0x4] sm:$0xf]
    %v109 = vld [vmem:[#allocation8 + $0x8] sm:$0xf]
    %v110 = vld [vmem:[#allocation8 + $0xc] sm:$0xf]
    %v115 = vunpack.c.l.b16 %v107
    %v116 = vunpack.c.l.b16 %v108
    %v117 = vunpack.c.l.b16 %v109
    %v118 = vunpack.c.l.b16 %v110
    %v119 = vpack.c.b16 %v116, %v115
    %v120 = vpack.c.b16 %v118, %v117
    %vm123 = vcmask 261120
    %v125 = vsel %vm123, %v106, 0
    %127 = vmatpush.bf16.msra.mxu0 0
    %128 = vmatpush.bf16.msra.mxu0 0
    %129 = vmatpush.bf16.msra.mxu0 0
    %130 = vmatpush.bf16.msra.mxu0 0
    %131 = vmatpush.bf16.msra.mxu0 0
    %132 = vmatpush.bf16.msra.mxu0 0
    %133 = vmatpush.bf16.msra.mxu0 %v120
    %134 = vmatpush.bf16.msra.mxu0 %v119
    %135 = vmatmul.bf16.gmra.mxu0 %v125
    %v136 = vpop.f32.mrf.mxu0
    %v137 = vadd.f32 0.0, %v136
    %v138 = vpop.f32.mrf.mxu0
    %v139 = vadd.f32 0.0, %v138
    %140 = vdwg.mxu0
    %v141 = vsel %vm123, %v104, 0.0
    %v142 = vsel %vm123, %v105, 0.0
    %v143 = vadd.f32 %v141, %v142
    %144 = vadd.xlane.f32.xlu0 %v143
    %v145 = vpop.xlane.xlu0 %144
    %v146 = vrot.slane %v145, 4
    %v147 = vadd.f32 %v145, %v146
    %v148 = vrot.slane %v147, 2
    %v149 = vadd.f32 %v147, %v148
    %v150 = vrot.slane %v149, 1
    %v151 = vadd.f32 %v149, %v150
    %s152 = vtos %v151
    %v153 = vrcp.pop 512.0
    %v154 = vmul.f32 512.0, %v153
    %v155 = vsub.f32 1.0, %v154
    %v156 = vmul.f32 %v153, %v155
    %v157 = vadd.f32 %v153, %v156
    %vm158 = vweird.f32 %v153
    %v159 = vsel %vm158, %v153, %v157
    %s160 = vtos %v159
    %s161 = smul.f32 %s152, %s160
    %v162 = vstv %s161
    %v163 = vsub.f32 %v104, %v162
    %v164 = vsub.f32 %v105, %v162
    %v165 = vmul.f32 %v163, %v163
    %v166 = vmul.f32 %v164, %v164
    %v167 = vsel %vm123, %v165, 0.0
    %v168 = vsel %vm123, %v166, 0.0
    %v169 = vadd.f32 %v167, %v168
    %170 = vadd.xlane.f32.xlu0 %v169
    %v171 = vpop.xlane.xlu0 %170
    %v172 = vrot.slane %v171, 4
    %v173 = vadd.f32 %v171, %v172
    %v174 = vrot.slane %v173, 2
    %v175 = vadd.f32 %v173, %v174
    %v176 = vrot.slane %v175, 1
    %v177 = vadd.f32 %v175, %v176
    %s178 = vtos %v177
    %v179 = vrcp.pop 511.0
    %v180 = vmul.f32 511.0, %v179
    %v181 = vsub.f32 1.0, %v180
    %v182 = vmul.f32 %v179, %v181
    %v183 = vadd.f32 %v179, %v182
    %vm184 = vweird.f32 %v179
    %v185 = vsel %vm184, %v179, %v183
    %s186 = vtos %v185
    %s187 = smul.f32 %s178, %s186
    %vm188 = vcmask 785408
    %v189 = vsel %vm188, %v137, 0.0
    %v190 = vsel %vm188, %v139, 0.0
    %v191 = vadd.f32 %v189, %v190
    %192 = vadd.xlane.f32.xlu0 %v191
    %v193 = vpop.xlane.xlu0 %192
    %v194 = vrot.slane %v193, 4
    %v195 = vadd.f32 %v193, %v194
    %v196 = vrot.slane %v195, 2
    %v197 = vadd.f32 %v195, %v196
    %v198 = vrot.slane %v197, 1
    %v199 = vadd.f32 %v197, %v198
    %s200 = vtos %v199
    %v201 = vrcp.pop 1536.0
    %v202 = vmul.f32 1536.0, %v201
    %v203 = vsub.f32 1.0, %v202
    %v204 = vmul.f32 %v201, %v203
    %v205 = vadd.f32 %v201, %v204
    %vm206 = vweird.f32 %v201
    %v207 = vsel %vm206, %v201, %v205
    %s208 = vtos %v207
    %s209 = smul.f32 %s200, %s208
    %v210 = vstv %s209
    %v211 = vsub.f32 %v137, %v210
    %v212 = vsub.f32 %v139, %v210
    %v213 = vmul.f32 %v211, %v211
    %v214 = vmul.f32 %v212, %v212
    %v215 = vsel %vm188, %v213, 0.0
    %v216 = vsel %vm188, %v214, 0.0
    %v217 = vadd.f32 %v215, %v216
    %218 = vadd.xlane.f32.xlu0 %v217
    %v219 = vpop.xlane.xlu0 %218
    %v220 = vrot.slane %v219, 4
    %v221 = vadd.f32 %v219, %v220
    %v222 = vrot.slane %v221, 2
    %v223 = vadd.f32 %v221, %v222
    %v224 = vrot.slane %v223, 1
    %v225 = vadd.f32 %v223, %v224
    %s226 = vtos %v225
    %v227 = vrcp.pop 1535.0
    %v228 = vmul.f32 1535.0, %v227
    %v229 = vsub.f32 1.0, %v228
    %v230 = vmul.f32 %v227, %v229
    %v231 = vadd.f32 %v227, %v230
    %vm232 = vweird.f32 %v227
    %v233 = vsel %vm232, %v227, %v231
    %s234 = vtos %v233
    %s235 = smul.f32 %s226, %s234
    %v236 = vld [vmem:[%s1] sm:$0xf]
    %v237 = vpack.c.bf16 %v236, %v236
    %v238 = vld [vmem:[#allocation9] sm:$0xff]
    %v239 = vld [vmem:[#allocation9 + $0x8] sm:$0xf]
    %v240 = vld [vmem:[#allocation9 + $0xc] sm:$0xff]
    %v241 = vld [vmem:[#allocation9 + $0x14] sm:$0xf]
    %v242 = vld [vmem:[#allocation9 + $0x18] sm:$0xff]
    %v243 = vld [vmem:[#allocation9 + $0x20] sm:$0xf]
    %v244 = vld [vmem:[#allocation9 + $0x24] sm:$0xff]
    %v245 = vld [vmem:[#allocation9 + $0x2c] sm:$0xf]
    %v246 = vld [vmem:[#allocation9 + $0x30] sm:$0xff]
    %v247 = vld [vmem:[#allocation9 + $0x38] sm:$0xf]
    %v248 = vld [vmem:[#allocation9 + $0x3c] sm:$0xff]
    %v249 = vld [vmem:[#allocation9 + $0x44] sm:$0xf]
    %v250 = vld [vmem:[#allocation9 + $0x48] sm:$0xff]
    %v251 = vld [vmem:[#allocation9 + $0x50] sm:$0xf]
    %v252 = vld [vmem:[#allocation9 + $0x54] sm:$0xff]
    %v253 = vld [vmem:[#allocation9 + $0x5c] sm:$0xf]
    %v254 = vld [vmem:[#allocation9 + $0x60] sm:$0xff]
    %v255 = vld [vmem:[#allocation9 + $0x68] sm:$0xf]
    %v256 = vld [vmem:[#allocation9 + $0x6c] sm:$0xff]
    %v257 = vld [vmem:[#allocation9 + $0x74] sm:$0xf]
    %v258 = vld [vmem:[#allocation9 + $0x78] sm:$0xff]
    %v259 = vld [vmem:[#allocation9 + $0x80] sm:$0xf]
    %v260 = vld [vmem:[#allocation9 + $0x84] sm:$0xff]
    %v261 = vld [vmem:[#allocation9 + $0x8c] sm:$0xf]
    %v262 = vld [vmem:[#allocation9 + $0x90] sm:$0xff]
    %v263 = vld [vmem:[#allocation9 + $0x98] sm:$0xf]
    %v264 = vld [vmem:[#allocation9 + $0x9c] sm:$0xff]
    %v265 = vld [vmem:[#allocation9 + $0xa4] sm:$0xf]
    %v266 = vld [vmem:[#allocation9 + $0xa8] sm:$0xff]
    %v267 = vld [vmem:[#allocation9 + $0xb0] sm:$0xf]
    %v268 = vld [vmem:[#allocation9 + $0xb4] sm:$0xff]
    %v269 = vld [vmem:[#allocation9 + $0xbc] sm:$0xf]
    %v302 = vunpack.c.l.b16 %v238
    %v303 = vunpack.c.h.b16 %v238
    %v304 = vunpack.c.l.b16 %v239
    %v305 = vunpack.c.l.b16 %v240
    %v306 = vunpack.c.h.b16 %v240
    %v307 = vunpack.c.l.b16 %v241
    %v308 = vunpack.c.l.b16 %v242
    %v309 = vunpack.c.h.b16 %v242
    %v310 = vunpack.c.l.b16 %v243
    %v311 = vunpack.c.l.b16 %v244
    %v312 = vunpack.c.h.b16 %v244
    %v313 = vunpack.c.l.b16 %v245
    %v314 = vunpack.c.l.b16 %v246
    %v315 = vunpack.c.h.b16 %v246
    %v316 = vunpack.c.l.b16 %v247
    %v317 = vunpack.c.l.b16 %v248
    %v318 = vunpack.c.h.b16 %v248
    %v319 = vunpack.c.l.b16 %v249
    %v320 = vunpack.c.l.b16 %v250
    %v321 = vunpack.c.h.b16 %v250
    %v322 = vunpack.c.l.b16 %v251
    %v323 = vunpack.c.l.b16 %v252
    %v324 = vunpack.c.h.b16 %v252
    %v325 = vunpack.c.l.b16 %v253
    %v326 = vunpack.c.l.b16 %v254
    %v327 = vunpack.c.h.b16 %v254
    %v328 = vunpack.c.l.b16 %v255
    %v329 = vunpack.c.l.b16 %v256
    %v330 = vunpack.c.h.b16 %v256
    %v331 = vunpack.c.l.b16 %v257
    %v332 = vunpack.c.l.b16 %v258
    %v333 = vunpack.c.h.b16 %v258
    %v334 = vunpack.c.l.b16 %v259
    %v335 = vunpack.c.l.b16 %v260
    %v336 = vunpack.c.h.b16 %v260
    %v337 = vunpack.c.l.b16 %v261
    %v338 = vunpack.c.l.b16 %v262
    %v339 = vunpack.c.h.b16 %v262
    %v340 = vunpack.c.l.b16 %v263
    %v341 = vunpack.c.l.b16 %v264
    %v342 = vunpack.c.h.b16 %v264
    %v343 = vunpack.c.l.b16 %v265
    %v344 = vunpack.c.l.b16 %v266
    %v345 = vunpack.c.h.b16 %v266
    %v346 = vunpack.c.l.b16 %v267
    %v347 = vunpack.c.l.b16 %v268
    %v348 = vunpack.c.h.b16 %v268
    %v349 = vunpack.c.l.b16 %v269
    %v350 = vpack.c.b16 %v305, %v302
    %v351 = vpack.c.b16 %v306, %v303
    %v352 = vpack.c.b16 %v307, %v304
    %v353 = vpack.c.b16 %v311, %v308
    %v354 = vpack.c.b16 %v312, %v309
    %v355 = vpack.c.b16 %v313, %v310
    %v356 = vpack.c.b16 %v317, %v314
    %v357 = vpack.c.b16 %v318, %v315
    %v358 = vpack.c.b16 %v319, %v316
    %v359 = vpack.c.b16 %v323, %v320
    %v360 = vpack.c.b16 %v324, %v321
    %v361 = vpack.c.b16 %v325, %v322
    %v362 = vpack.c.b16 %v329, %v326
    %v363 = vpack.c.b16 %v330, %v327
    %v364 = vpack.c.b16 %v331, %v328
    %v365 = vpack.c.b16 %v335, %v332
    %v366 = vpack.c.b16 %v336, %v333
    %v367 = vpack.c.b16 %v337, %v334
    %v368 = vpack.c.b16 %v341, %v338
    %v369 = vpack.c.b16 %v342, %v339
    %v370 = vpack.c.b16 %v343, %v340
    %v371 = vpack.c.b16 %v347, %v344
    %v372 = vpack.c.b16 %v348, %v345
    %v373 = vpack.c.b16 %v349, %v346
    %398 = vmatpush.bf16.msra.mxu0 %v371
    %399 = vmatpush.bf16.msra.mxu0 %v368
    %400 = vmatpush.bf16.msra.mxu0 %v365
    %401 = vmatpush.bf16.msra.mxu0 %v362
    %402 = vmatpush.bf16.msra.mxu0 %v359
    %403 = vmatpush.bf16.msra.mxu0 %v356
    %404 = vmatpush.bf16.msra.mxu0 %v353
    %405 = vmatpush.bf16.msra.mxu0 %v350
    %406 = vmatmul.bf16.gmra.mxu0 %v237
    %v407 = vpop.f32.mrf.mxu0
    %v408 = vadd.f32 0.0, %v407
    %v409 = vpop.f32.mrf.mxu0
    %410 = vdwg.mxu0
    %411 = vmatpush.bf16.msra.mxu0 %v372
    %412 = vmatpush.bf16.msra.mxu0 %v369
    %413 = vmatpush.bf16.msra.mxu0 %v366
    %414 = vmatpush.bf16.msra.mxu0 %v363
    %415 = vmatpush.bf16.msra.mxu0 %v360
    %416 = vmatpush.bf16.msra.mxu0 %v357
    %417 = vmatpush.bf16.msra.mxu0 %v354
    %418 = vmatpush.bf16.msra.mxu0 %v351
    %419 = vmatmul.bf16.gmra.mxu0 %v237
    %v420 = vpop.f32.mrf.mxu0
    %v421 = vadd.f32 0.0, %v420
    %v422 = vpop.f32.mrf.mxu0
    %423 = vdwg.mxu0
    %424 = vmatpush.bf16.msra.mxu0 %v373
    %425 = vmatpush.bf16.msra.mxu0 %v370
    %426 = vmatpush.bf16.msra.mxu0 %v367
    %427 = vmatpush.bf16.msra.mxu0 %v364
    %428 = vmatpush.bf16.msra.mxu0 %v361
    %429 = vmatpush.bf16.msra.mxu0 %v358
    %430 = vmatpush.bf16.msra.mxu0 %v355
    %431 = vmatpush.bf16.msra.mxu0 %v352
    %432 = vmatmul.bf16.gmra.mxu0 %v237
    %v433 = vpop.f32.mrf.mxu0
    %v434 = vadd.f32 0.0, %v433
    %v435 = vpop.f32.mrf.mxu0
    %436 = vdwg.mxu0
    %v437 = vld [vmem:[#allocation3] sm:$0xff]
    %v438 = vld [vmem:[#allocation3 + $0x8] sm:$0xff]
    %s439 = scalar_lea.vmem [#allocation3], 16
    %v440 = vld [vmem:[%s439] sm:$0xff]
    %v441 = vld [vmem:[%s439 + $0x8] sm:$0xff]
    %vm442 = vcmask 31744
    %v444 = vsel %vm442, %v440, 0
    %v447 = vsel %vm442, %v441, 0
    %vm449 = vcmask 1043456
    %v451 = vsel %vm449, %v421, 0
    %453 = vmatpush.msra.mxu0 0.0
    %454 = vmatpush.msra.mxu0 0.0
    %455 = vmatpush.msra.mxu0 0.0
    %456 = vmatpush.msra.mxu0 0.0
    %457 = vmatpush.msra.mxu0 0.0
    %458 = vmatpush.msra.mxu0 0.0
    %459 = vmatpush.msra.mxu0 0.0
    %460 = vmatpush.msra.mxu0 0.0
    %461 = vmatpush.msra.mxu0 0.0
    %462 = vmatpush.msra.mxu0 0.0
    %463 = vmatpush.msra.mxu0 0.0
    %464 = vmatpush.msra.mxu0 0.0
    %465 = vmatpush.msra.mxu0 0.0
    %466 = vmatpush.msra.mxu0 0.0
    %467 = vmatpush.msra.mxu0 0.0
    %468 = vmatpush.msra.mxu0 %v451
    %469 = vmatmul.f32.gmra.mxu0 %v444
    %v470 = vpop.f32.mrf.mxu0
    %v471 = vadd.f32 0.0, %v470
    %472 = vmatmul.f32.gmra.mxu0 %v447
    %v473 = vpop.f32.mrf.mxu0
    %v474 = vadd.f32 0.0, %v473
    %475 = vdwg.mxu0
    %v477 = vsel %vm442, %v437, 0
    %v480 = vsel %vm442, %v438, 0
    %v483 = vsel %vm449, %v408, 0
    %485 = vmatpush.msra.mxu0 0.0
    %486 = vmatpush.msra.mxu0 0.0
    %487 = vmatpush.msra.mxu0 0.0
    %488 = vmatpush.msra.mxu0 0.0
    %489 = vmatpush.msra.mxu0 0.0
    %490 = vmatpush.msra.mxu0 0.0
    %491 = vmatpush.msra.mxu0 0.0
    %492 = vmatpush.msra.mxu0 0.0
    %493 = vmatpush.msra.mxu0 0.0
    %494 = vmatpush.msra.mxu0 0.0
    %495 = vmatpush.msra.mxu0 0.0
    %496 = vmatpush.msra.mxu0 0.0
    %497 = vmatpush.msra.mxu0 0.0
    %498 = vmatpush.msra.mxu0 0.0
    %499 = vmatpush.msra.mxu0 0.0
    %500 = vmatpush.msra.mxu0 %v483
    %501 = vmatmul.f32.gmra.mxu0 %v477
    %v502 = vpop.f32.mrf.mxu0
    %v503 = vadd.f32 %v471, %v502
    %504 = vmatmul.f32.gmra.mxu0 %v480
    %v505 = vpop.f32.mrf.mxu0
    %v506 = vadd.f32 %v474, %v505
    %507 = vdwg.mxu0
    %s508 = scalar_lea.vmem [#allocation3], 32
    %v509 = vld [vmem:[%s508] sm:$0xff]
    %v510 = vld [vmem:[%s508 + $0x8] sm:$0xff]
    %v512 = vsel %vm442, %v509, 0
    %v515 = vsel %vm442, %v510, 0
    %v518 = vsel %vm449, %v434, 0
    %520 = vmatpush.msra.mxu0 0.0
    %521 = vmatpush.msra.mxu0 0.0
    %522 = vmatpush.msra.mxu0 0.0
    %523 = vmatpush.msra.mxu0 0.0
    %524 = vmatpush.msra.mxu0 0.0
    %525 = vmatpush.msra.mxu0 0.0
    %526 = vmatpush.msra.mxu0 0.0
    %527 = vmatpush.msra.mxu0 0.0
    %528 = vmatpush.msra.mxu0 0.0
    %529 = vmatpush.msra.mxu0 0.0
    %530 = vmatpush.msra.mxu0 0.0
    %531 = vmatpush.msra.mxu0 0.0
    %532 = vmatpush.msra.mxu0 0.0
    %533 = vmatpush.msra.mxu0 0.0
    %534 = vmatpush.msra.mxu0 0.0
    %535 = vmatpush.msra.mxu0 %v518
    %536 = vmatmul.f32.gmra.mxu0 %v512
    %v537 = vpop.f32.mrf.mxu0
    %v538 = vadd.f32 0.0, %v537
    %539 = vmatmul.f32.gmra.mxu0 %v515
    %v540 = vpop.f32.mrf.mxu0
    %v541 = vadd.f32 0.0, %v540
    %542 = vdwg.mxu0
    %v543 = vadd.f32 %v503, %v538
    %v544 = vadd.f32 %v506, %v541
    %v545 = vld [vmem:[%s7] sm:$0x1]
    %v547 = vperm.slane %v545, 0
    %v549 = vadd.f32 %v543, %v547
    %v550 = vadd.f32 %v544, %v547
    %v551 = vxor.u32 %v549, 2147483648
    %v552 = vxor.u32 %v550, 2147483648
    %v553 = vmul.f32 %v551, 1.442695
    %v554 = vpow.pop %v553
    %v555 = vmul.f32 %v552, 1.442695
    %v556 = vpow.pop %v555
    %v557 = vadd.f32 %v554, 1.0
    %v558 = vadd.f32 %v556, 1.0
    %v559 = vrcp.pop %v557
    %v560 = vmul.f32 %v557, %v559
    %v561 = vsub.f32 1.0, %v560
    %v562 = vmul.f32 %v559, %v561
    %v563 = vadd.f32 %v559, %v562
    %vm564 = vweird.f32 %v557
    %vm565 = vweird.f32 %v559
    %vm566 = vmor %vm564, %vm565
    %v567 = vsel %vm566, %v559, %v563
    %v568 = vand.u32 2147483647, %v557
    %vm569 = vcmp.eq.f32.partialorder %v568, 8.507059e+37
    %v570 = vand.u32 %v557, 2147483648
    %v571 = vor.u32 1.1754944e-38, %v570
    %v572 = vsel %vm569, %v571, %v567
    %v573 = vmul.f32 1.0, %v572
    %v574 = vrcp.pop %v558
    %v575 = vmul.f32 %v558, %v574
    %v576 = vsub.f32 1.0, %v575
    %v577 = vmul.f32 %v574, %v576
    %v578 = vadd.f32 %v574, %v577
    %vm579 = vweird.f32 %v558
    %vm580 = vweird.f32 %v574
    %vm581 = vmor %vm579, %vm580
    %v582 = vsel %vm581, %v574, %v578
    %v583 = vand.u32 2147483647, %v558
    %vm584 = vcmp.eq.f32.partialorder %v583, 8.507059e+37
    %v585 = vand.u32 %v558, 2147483648
    %v586 = vor.u32 1.1754944e-38, %v585
    %v587 = vsel %vm584, %v586, %v582
    %v588 = vmul.f32 1.0, %v587
    %v589 = vtanh.pop %v549
    %v590 = vtanh.pop %v550
    %593 = vrot.lane.b32.xlu0 %v589, 64
    %v594 = vpop.permute.xlu0 %593
    %595 = vrot.lane.b32.xlu0 %v590, 64
    %v596 = vpop.permute.xlu0 %595
    %v599 = vmul.f32 %v573, %v594
    %v600 = vmul.f32 %v588, %v596
    %v601 = vtanh.pop %v599
    %v602 = vtanh.pop %v600
    %605 = vrot.lane.b32.xlu0 %v601, 32
    %v606 = vpop.permute.xlu0 %605
    %607 = vrot.lane.b32.xlu0 %v602, 32
    %v608 = vpop.permute.xlu0 %607
    %v611 = vmul.f32 %v573, %v606
    %v612 = vmul.f32 %v588, %v608
    %v613 = vld [vmem:[#allocation6] sm:$0xff]
    %v614 = vld [vmem:[#allocation6 + $0x8] sm:$0xff]
    %v615 = vld [vmem:[%s2] sm:$0xff]
    %vm616 = vcmask 64512
    %v618 = vsel %vm616, %v613, 0
    %v621 = vsel %vm616, %v614, 0
    %623 = vmatpush.msra.mxu0 0.0
    %624 = vmatpush.msra.mxu0 0.0
    %625 = vmatpush.msra.mxu0 0.0
    %626 = vmatpush.msra.mxu0 0.0
    %627 = vmatpush.msra.mxu0 0.0
    %628 = vmatpush.msra.mxu0 0.0
    %629 = vmatpush.msra.mxu0 0.0
    %630 = vmatpush.msra.mxu0 0.0
    %631 = vmatpush.msra.mxu0 0.0
    %632 = vmatpush.msra.mxu0 0.0
    %633 = vmatpush.msra.mxu0 0.0
    %634 = vmatpush.msra.mxu0 0.0
    %635 = vmatpush.msra.mxu0 0.0
    %636 = vmatpush.msra.mxu0 0.0
    %637 = vmatpush.msra.mxu0 0.0
    %638 = vmatpush.msra.mxu0 %v615
    %639 = vmatmul.f32.gmra.mxu0 %v618
    %v640 = vpop.f32.mrf.mxu0
    %v641 = vadd.f32 0.0, %v640
    %642 = vmatmul.f32.gmra.mxu0 %v621
    %v643 = vpop.f32.mrf.mxu0
    %v644 = vadd.f32 0.0, %v643
    %645 = vdwg.mxu0
    %v646 = vpack.c.bf16 %v644, %v641
    %v647 = vld [vmem:[%s8] sm:$0xf]
    %v648 = vld [vmem:[%s8 + $0x4] sm:$0xf]
    %v649 = vld [vmem:[%s8 + $0x8] sm:$0xf]
    %v650 = vld [vmem:[%s8 + $0xc] sm:$0xf]
    %v651 = vld [vmem:[%s8 + $0x10] sm:$0xf]
    %v652 = vld [vmem:[%s8 + $0x14] sm:$0xf]
    %v653 = vld [vmem:[%s8 + $0x18] sm:$0xf]
    %v654 = vld [vmem:[%s8 + $0x1c] sm:$0xf]
    %v655 = vld [vmem:[%s9] sm:$0x1]
    %v657 = vperm.slane %v655, 0
    %v667 = vunpack.c.l.b16 %v647
    %v668 = vunpack.c.l.b16 %v648
    %v669 = vunpack.c.l.b16 %v649
    %v670 = vunpack.c.l.b16 %v650
    %v671 = vunpack.c.l.b16 %v651
    %v672 = vunpack.c.l.b16 %v652
    %v673 = vunpack.c.l.b16 %v653
    %v674 = vunpack.c.l.b16 %v654
    %v675 = vpack.c.b16 %v668, %v667
    %v676 = vpack.c.b16 %v670, %v669
    %v677 = vpack.c.b16 %v672, %v671
    %v678 = vpack.c.b16 %v674, %v673
    %vm683 = vcmask 523264
    %v685 = vsel %vm683, %v646, 0
    %687 = vmatpush.bf16.msra.mxu0 0
    %688 = vmatpush.bf16.msra.mxu0 0
    %689 = vmatpush.bf16.msra.mxu0 0
    %690 = vmatpush.bf16.msra.mxu0 0
    %691 = vmatpush.bf16.msra.mxu0 %v678
    %692 = vmatpush.bf16.msra.mxu0 %v677
    %693 = vmatpush.bf16.msra.mxu0 %v676
    %694 = vmatpush.bf16.msra.mxu0 %v675
    %695 = vmatmul.bf16.gmra.mxu0 %v685
    %v696 = vpop.f32.mrf.mxu0
    %v697 = vadd.f32 %v657, %v696
    %v698 = vpop.f32.mrf.mxu0
    %v699 = vadd.f32 %v657, %v698
    %700 = vdwg.mxu0
    %v701 = vxor.u32 %v697, 2147483648
    %v702 = vxor.u32 %v699, 2147483648
    %v703 = vmul.f32 %v701, 1.442695
    %v704 = vpow.pop %v703
    %v705 = vmul.f32 %v702, 1.442695
    %v706 = vpow.pop %v705
    %v707 = vadd.f32 %v704, 1.0
    %v708 = vadd.f32 %v706, 1.0
    %v709 = vrcp.pop %v707
    %v710 = vmul.f32 %v707, %v709
    %v711 = vsub.f32 1.0, %v710
    %v712 = vmul.f32 %v709, %v711
    %v713 = vadd.f32 %v709, %v712
    %vm714 = vweird.f32 %v707
    %vm715 = vweird.f32 %v709
    %vm716 = vmor %vm714, %vm715
    %v717 = vsel %vm716, %v709, %v713
    %v718 = vand.u32 2147483647, %v707
    %vm719 = vcmp.eq.f32.partialorder %v718, 8.507059e+37
    %v720 = vand.u32 %v707, 2147483648
    %v721 = vor.u32 1.1754944e-38, %v720
    %v722 = vsel %vm719, %v721, %v717
    %v723 = vmul.f32 1.0, %v722
    %v724 = vrcp.pop %v708
    %v725 = vmul.f32 %v708, %v724
    %v726 = vsub.f32 1.0, %v725
    %v727 = vmul.f32 %v724, %v726
    %v728 = vadd.f32 %v724, %v727
    %vm729 = vweird.f32 %v708
    %vm730 = vweird.f32 %v724
    %vm731 = vmor %vm729, %vm730
    %v732 = vsel %vm731, %v724, %v728
    %v733 = vand.u32 2147483647, %v708
    %vm734 = vcmp.eq.f32.partialorder %v733, 8.507059e+37
    %v735 = vand.u32 %v708, 2147483648
    %v736 = vor.u32 1.1754944e-38, %v735
    %v737 = vsel %vm734, %v736, %v732
    %v738 = vmul.f32 1.0, %v737
    %v739 = vtanh.pop %v697
    %v740 = vtanh.pop %v699
    %743 = vrot.lane.b32.xlu0 %v739, 64
    %v744 = vpop.permute.xlu0 %743
    %745 = vrot.lane.b32.xlu0 %v740, 64
    %v746 = vpop.permute.xlu0 %745
    %v749 = vmul.f32 %v723, %v744
    %v750 = vmul.f32 %v738, %v746
    %v751 = vtanh.pop %v749
    %v752 = vtanh.pop %v750
    %755 = vrot.lane.b32.xlu0 %v751, 32
    %v756 = vpop.permute.xlu0 %755
    %757 = vrot.lane.b32.xlu0 %v752, 32
    %v758 = vpop.permute.xlu0 %757
    %v761 = vmul.f32 %v723, %v756
    %v762 = vmul.f32 %v738, %v758
    %s763 = sld [smem:[#allocation2]]
    %s764 = smul.f32 %s235, %s763
    %s765 = sadd.f32 %s187, %s764
    %v766 = vstv %s765
    %v767 = vrcp.pop %v766
    %v768 = vmul.f32 %v766, %v767
    %v769 = vsub.f32 1.0, %v768
    %v770 = vmul.f32 %v767, %v769
    %v771 = vadd.f32 %v767, %v770
    %vm772 = vweird.f32 %v766
    %vm773 = vweird.f32 %v767
    %vm774 = vmor %vm772, %vm773
    %v775 = vsel %vm774, %v767, %v771
    %v776 = vand.u32 2147483647, %v766
    %vm777 = vcmp.eq.f32.partialorder %v776, 8.507059e+37
    %v778 = vand.u32 %v766, 2147483648
    %v779 = vor.u32 1.1754944e-38, %v778
    %v780 = vsel %vm777, %v779, %v775
    %s781 = vtos %v780
    %s782 = smul.f32 %s187, %s763
    %v783 = vstv %s782
    %v784 = vmul.f32 %v611, %v783
    %v785 = vmul.f32 %v612, %v783
    %v786 = vstv %s235
    %v787 = vmul.f32 %v761, %v786
    %v788 = vmul.f32 %v762, %v786
    %v789 = vadd.f32 %v784, %v787
    %v790 = vadd.f32 %v785, %v788
    %v791 = vstv %s781
    %v792 = vmul.f32 %v789, %v791
    %v793 = vmul.f32 %v790, %v791
    %796 = vrot.lane.b32.xlu0 %v792, 64
    %v797 = vpop.permute.xlu0 %796
    %798 = vrot.lane.b32.xlu0 %v793, 64
    %v799 = vpop.permute.xlu0 %798
    %802 = vst.msk [vmem:[#allocation11] sm:$0xff] %vm123, %v797
    %803 = vst.msk [vmem:[#allocation11 + $0x8] sm:$0xff] %vm123, %v799
    // Predicated region
    $region62: #{_lambda_.1} parent=1 // pred_check
      _
    $region63: #{_lambda_.1} parent=1 // pred_check_branch
      %805 = sbr.rel (0) target = $region65
    $region64: #{_lambda_.1} parent=1 // pred_region
      %807 = vsyncadd [#allocation5], 0
      %s808 = sshll.u32 [#allocation11], 4
      %s809 = int_to_ptr.vmem [resolvable:$true] %s808
      %s810 = sshll.u32 %s11, 4
      %s811 = int_to_ptr.hbm [resolvable:$true] %s810
      %816 = dma.vmem_to_hbm [thread:$0]  %s809, 256, %s811, [#allocation5], 128, 128, 8
    $region65: #{_lambda_.1} parent=1 // pred_fallthru
      _
    // Predicated region
    $region66: #{_lambda_.1} parent=1 // pred_check
      _
    $region67: #{_lambda_.1} parent=1 // pred_check_branch
      %818 = sbr.rel (0) target = $region69
    $region68: #{_lambda_.1} parent=1 // pred_region
      %820 = dma.done [#allocation5], 256
    $region69: #{_lambda_.1} parent=1 // pred_fallthru
      _
    %821 = vsyncpa [#allocation4], 1
    %822 = vsyncpa [#allocation7], 1
    %823 = vsyncpa [#allocation10], 1
    %824 = vsyncpa [#allocation5], 1

</llo_original>
